<compile_context>
chip_gen: v7x
topology: tpu7x:2x2x1
jax: 0.10.0
libtpu: 0.0.40
codegen_flags: <defaults>
</compile_context>

<pallas_src>
import math

import jax
import jax.numpy as jnp
from jax import lax
from jax.experimental import pallas as pl
from jax.experimental.pallas import tpu as pltpu

_INV_SQRT2 = 0.7071067811865476
_LN_EPS = 1e-5
_NORM_EPS = 1e-12          # F.normalize default eps
_MASK_NEG = 1e10           # TokenAggregation keep_policy mask constant


def is_sqr(n):
    a = int(math.sqrt(n))
    return a * a == n


def l2norm(x, axis=-1, eps=_NORM_EPS):
    n = jnp.sqrt(jnp.sum(x * x, axis=axis, keepdims=True))
    return x / jnp.maximum(n, eps)


# ----------------------------------------------------------------------------
# Prologue Pallas kernel: caption-invariant TokenAggregation logits.
#   LayerNorm -> Linear -> GELU -> Linear on all L spatial tokens, run ONCE
#   (hoisted out of the per-caption grid, per the performance review).
# ----------------------------------------------------------------------------
def _aggr_logits_kernel(x_ref, g_ref, bln_ref, w1_ref, b1_ref, w2_ref, b2_ref,
                        o_ref):
    B, L, C = x_ref.shape
    x2 = x_ref[...].reshape(B * L, C)                      # batch -> sublanes
    mu = jnp.mean(x2, axis=-1, keepdims=True)
    var = jnp.mean(jnp.square(x2 - mu), axis=-1, keepdims=True)
    xn = (x2 - mu) * lax.rsqrt(var + _LN_EPS)
    xn = xn * g_ref[...] + bln_ref[...]
    h = jnp.dot(xn, w1_ref[...], preferred_element_type=jnp.float32) + b1_ref[...]
    h = 0.5 * h * (1.0 + lax.erf(h * _INV_SQRT2))          # exact GELU
    o_ref[...] = (jnp.dot(h, w2_ref[...], preferred_element_type=jnp.float32)
                  + b2_ref[...])


def _aggr_logits_pallas(x_spatial, params):
    B, L, C = x_spatial.shape
    H = params["w1"].shape[1]
    P = params["w2"].shape[1]
    return pl.pallas_call(
        _aggr_logits_kernel,
        out_shape=jax.ShapeDtypeStruct((B * L, P), jnp.float32),
        grid=(1,),
        in_specs=[
            pl.BlockSpec((B, L, C), lambda i: (0, 0, 0)),
            pl.BlockSpec((1, C), lambda i: (0, 0)),
            pl.BlockSpec((1, C), lambda i: (0, 0)),
            pl.BlockSpec((C, H), lambda i: (0, 0)),
            pl.BlockSpec((1, H), lambda i: (0, 0)),
            pl.BlockSpec((H, P), lambda i: (0, 0)),
            pl.BlockSpec((1, P), lambda i: (0, 0)),
        ],
        out_specs=pl.BlockSpec((B * L, P), lambda i: (0, 0)),
        compiler_params=pltpu.CompilerParams(
            dimension_semantics=("arbitrary",)),
    )(x_spatial,
      params["ln_gamma"].reshape(1, C), params["ln_beta"].reshape(1, C),
      params["w1"], params["b1"].reshape(1, H),
      params["w2"], params["b2"].reshape(1, P))


# ----------------------------------------------------------------------------
# Fused Pallas kernel: one grid step = a tile of NC captions, all batch rows.
#   masked softmax + aggregation bmm + extra token + l2norm + clipped-cosine
#   xattn -> one lane-dense (B, NC) similarity block.
# ----------------------------------------------------------------------------
def _fused_caption_kernel(wt_ref, x_ref, cls_ref, keep_ref, score_ref,
                          capt_ref, invw_ref, o_ref):
    gi = pl.program_id(0)
    B, P, L = wt_ref.shape
    NC = keep_ref.shape[0]
    C = x_ref.shape[2]
    W = capt_ref.shape[2]

    wt_all = wt_ref[...]                                   # (B, P, L), pre-scaled
    x = x_ref[...]                                         # (B, L, C)
    cls_n = cls_ref[...].reshape(B, C)                     # pre-normalized cls (or 0)

    def _norm_rows(t):                                     # F.normalize(dim=-1)
        ss = jnp.sum(t * t, axis=-1, keepdims=True)
        return t * lax.rsqrt(jnp.maximum(ss, _NORM_EPS * _NORM_EPS))

    lane_ids = lax.broadcasted_iota(jnp.int32, (1, NC), 1)
    acc = jnp.zeros((B, NC), jnp.float32)

    for j in range(NC):                                    # unrolled caption tile
        keep = keep_ref[j]                                 # (B, L) in {0, 1}
        sc = score_ref[j]                                  # (B, L)
        cap_t = capt_ref[j]                                # (C, W) l2norm + zero-pad

        # --- TokenAggregation keep_policy branch: mask, softmax, bmm --------
        wt = wt_all - (1.0 - keep)[:, None, :] * _MASK_NEG
        wt = wt - jnp.max(wt, axis=-1, keepdims=True)
        e = jnp.exp(wt)
        attn = e / jnp.sum(e, axis=-1, keepdims=True)      # (B, P, L)
        aggr = jnp.einsum("bpl,blc->bpc", attn, x,
                          preferred_element_type=jnp.float32)   # (B, P, C)

        # --- extra token: softmax over NON-kept scores (guarded 0/0 -> 0) ---
        nk = jnp.where(keep > 0.5, -1e30, sc)
        nk = nk - jnp.max(nk, axis=-1, keepdims=True)
        en = jnp.exp(nk) * (1.0 - keep)
        den = jnp.maximum(jnp.sum(en, axis=-1, keepdims=True), 1e-30)
        wn = en / den                                      # (B, L)
        extra = jnp.sum(wn[:, :, None] * x, axis=1)        # (B, C)

        # --- clipped-cosine xattn: canonical (M, C) @ (C, W) matmuls --------
        aggr_n = _norm_rows(aggr).reshape(B * P, C)
        s_a = jnp.dot(aggr_n, cap_t, preferred_element_type=jnp.float32)
        m_a = jnp.max(jnp.maximum(s_a, 0.0).reshape(B, P, W), axis=1)   # (B, W)
        s_e = jnp.dot(_norm_rows(extra), cap_t, preferred_element_type=jnp.float32)
        s_c = jnp.dot(cls_n, cap_t, preferred_element_type=jnp.float32)
        row_max = jnp.maximum(m_a, jnp.maximum(jnp.maximum(s_e, 0.0),
                                               jnp.maximum(s_c, 0.0)))  # (B, W)

        # padded word columns contribute exactly 0; divide by true word count
        col = jnp.sum(row_max, axis=-1, keepdims=True) * invw_ref[gi * NC + j]
        acc = acc + col * (lane_ids == j).astype(jnp.float32)

    o_ref[0] = acc                                         # single lane-dense store


def _fused_caption_pallas(wt_all, x_spatial, cls_norm, keep_mask, score_all,
                          cap_t, inv_words, nc_tile):
    B, P, L = wt_all.shape
    C = x_spatial.shape[2]
    n_caps_pad, _, W = cap_t.shape
    NC = nc_tile
    G = n_caps_pad // NC

    return pl.pallas_call(
        _fused_caption_kernel,
        out_shape=jax.ShapeDtypeStruct((G, B, NC), jnp.float32),
        grid=(G,),
        in_specs=[
            pl.BlockSpec((B, P, L), lambda i: (0, 0, 0)),          # aggr logits
            pl.BlockSpec((B, L, C), lambda i: (0, 0, 0)),          # spatial tokens
            pl.BlockSpec((B, 1, C), lambda i: (0, 0, 0)),          # normalized cls
            pl.BlockSpec((NC, B, L), lambda i: (i, 0, 0)),         # keep-mask tile
            pl.BlockSpec((NC, B, L), lambda i: (i, 0, 0)),         # score tile
            pl.BlockSpec((NC, C, W), lambda i: (i, 0, 0)),         # caption words^T
            pl.BlockSpec(memory_space=pltpu.MemorySpace.SMEM),     # 1/n_word
        ],
        out_specs=pl.BlockSpec((1, B, NC), lambda i: (i, 0, 0)),
        compiler_params=pltpu.CompilerParams(
            dimension_semantics=("parallel",),                     # megacore / v7x
            vmem_limit_bytes=32 * 1024 * 1024),
    )(wt_all, x_spatial, cls_norm, keep_mask, score_all, cap_t, inv_words)


# ----------------------------------------------------------------------------
# Shared (no_grad) score prologue — batched over captions, used by both paths.
# ----------------------------------------------------------------------------
def _token_scores(img_spatial_embs, img_spatial_embs_norm, cap_embs, cap_lens):
    n_caps, W_max, _ = cap_embs.shape
    glo_norm = l2norm(jnp.mean(img_spatial_embs, axis=1, keepdims=True))
    self_attn = jnp.sum(glo_norm * img_spatial_embs_norm, axis=-1)      # (B, L)
    n_words = jnp.asarray([int(n) for n in cap_lens], jnp.int32)
    word_mask = (jnp.arange(W_max)[None, :] < n_words[:, None]).astype(jnp.float32)
    cap_means = (jnp.sum(cap_embs * word_mask[:, :, None], axis=1)
                 / n_words[:, None].astype(jnp.float32))                # (n_caps, C)
    cap_glo_norm = l2norm(cap_means, axis=-1)
    cap_attn = jnp.einsum("nc,blc->nbl", cap_glo_norm, img_spatial_embs_norm)
    return self_attn[None, :, :] + cap_attn                             # (n_caps, B, L)


# ----------------------------------------------------------------------------
# Pure-JAX reference of the same forward pass (faithful gather-based port).
# ----------------------------------------------------------------------------
def token_aggregation_ref(x, p):
    mu = jnp.mean(x, axis=-1, keepdims=True)
    var = jnp.mean(jnp.square(x - mu), axis=-1, keepdims=True)
    xn = (x - mu) / jnp.sqrt(var + _LN_EPS) * p["ln_gamma"] + p["ln_beta"]
    h = xn @ p["w1"] + p["b1"]
    h = 0.5 * h * (1.0 + lax.erf(h * _INV_SQRT2))
    w = h @ p["w2"] + p["b2"]                                  # (B, K, P)
    wt = jnp.swapaxes(w, 1, 2) * p["scale"].reshape(())        # (B, P, K)
    attn = jax.nn.softmax(wt, axis=-1)
    return jnp.einsum("bpk,bkc->bpc", attn, x)


def mask_xattn_one_text_ref(img_tokens, cap_words):
    # TODO(synk): `mask_xattn_one_text` is not defined in the provided source;
    # implemented as the standard t2i similarity (clipped cosine, max over
    # image tokens, mean over caption words).
    sim = jnp.einsum("wc,bmc->bwm", cap_words, img_tokens)
    sim = jnp.maximum(sim, 0.0)
    return jnp.mean(jnp.max(sim, axis=-1), axis=-1, keepdims=True)


def _reference_forward(img_embs, cap_embs, cap_lens, params, cfg):
    B_v, L_v, C = img_embs.shape
    sparse_ratio = cfg["sparse_ratio"]

    img_embs_norm = l2norm(img_embs)
    cap_embs_norm = l2norm(cap_embs)

    has_cls_token = not is_sqr(L_v)
    if has_cls_token:
        img_cls_emb = img_embs[:, 0:1, :]
        img_spatial_embs = img_embs[:, 1:, :]
        img_spatial_embs_norm = img_embs_norm[:, 1:, :]
    else:
        img_spatial_embs = img_embs
        img_spatial_embs_norm = img_embs_norm

    L = img_spatial_embs.shape[1]
    num_keep = math.ceil(L * sparse_ratio)
    batch_idx = jnp.arange(B_v)[:, None]

    score_all = _token_scores(img_spatial_embs, img_spatial_embs_norm,
                              cap_embs, cap_lens)

    improve_sims, score_mask_all = [], []
    for i in range(len(cap_lens)):
        n_word = int(cap_lens[i])
        cap_i_norm = cap_embs_norm[i, :n_word, :]
        score = score_all[i]                                            # (B, L)
        order = jnp.argsort(-score, axis=1)
        score_sort = jnp.take_along_axis(score, order, axis=1)
        keep_policy = order[:, :num_keep]
        non_keep_policy = order[:, num_keep:]
        score_mask = jnp.zeros_like(score).at[batch_idx, keep_policy].set(1.0)
        select_tokens = jnp.take_along_axis(
            img_spatial_embs, keep_policy[:, :, None], axis=1)          # (B, K, C)
        non_tokens = jnp.take_along_axis(
            img_spatial_embs, non_keep_policy[:, :, None], axis=1)
        non_keep_score = jax.nn.softmax(score_sort[:, num_keep:], axis=1)[:, :, None]
        extra_token = jnp.sum(non_tokens * non_keep_score, axis=1, keepdims=True)

        aggr_tokens = token_aggregation_ref(select_tokens, params)      # (B, P, C)
        keep_spatial_tokens = jnp.concatenate([aggr_tokens, extra_token], axis=1)
        if has_cls_token:
            sel = jnp.concatenate([img_cls_emb, keep_spatial_tokens], axis=1)
        else:
            sel = keep_spatial_tokens
        sel = l2norm(sel)

        improve_sims.append(mask_xattn_one_text_ref(sel, cap_i_norm))   # (B, 1)
        score_mask_all.append(score_mask)

    return (jnp.concatenate(improve_sims, axis=1),
            jnp.stack(score_mask_all, axis=0))


# ----------------------------------------------------------------------------
# Full forward: JAX glue (top-k / scatter) + prologue MLP kernel + fused kernel.
# ----------------------------------------------------------------------------
def cross_sparse_aggr_forward(img_embs, cap_embs, cap_lens, params, cfg,
                              use_pallas=True, nc_tile=4):
    if not use_pallas:
        return _reference_forward(img_embs, cap_embs, cap_lens, params, cfg)

    B_v, L_v, C = img_embs.shape
    n_caps, W_max, _ = cap_embs.shape
    sparse_ratio = cfg["sparse_ratio"]

    img_embs_norm = l2norm(img_embs)
    cap_embs_norm = l2norm(cap_embs)

    has_cls_token = not is_sqr(L_v)
    if has_cls_token:
        cls_norm = img_embs_norm[:, 0:1, :]          # normalized once (hoisted)
        img_spatial_embs = img_embs[:, 1:, :]
        img_spatial_embs_norm = img_embs_norm[:, 1:, :]
    else:
        # a zero cls row never changes the ReLU-clipped max -> harmless slot
        cls_norm = jnp.zeros((B_v, 1, C), jnp.float32)
        img_spatial_embs = img_embs
        img_spatial_embs_norm = img_embs_norm

    L = img_spatial_embs.shape[1]
    P = params["w2"].shape[1]
    num_keep = math.ceil(L * sparse_ratio)

    # --- shared no_grad score prologue + data-dependent top-k (plain JAX) ---
    score_all = _token_scores(img_spatial_embs, img_spatial_embs_norm,
                              cap_embs, cap_lens)                       # (n_caps, B, L)
    order = jnp.argsort(-score_all, axis=-1)
    keep_policy = order[..., :num_keep]
    cap_ids = jnp.arange(n_caps)[:, None, None]
    b_ids = jnp.arange(B_v)[None, :, None]
    score_mask = jnp.zeros_like(score_all).at[cap_ids, b_ids, keep_policy].set(1.0)

    # --- caption-side constants: normalized, zero-padded, pre-transposed ----
    n_words = jnp.asarray([int(n) for n in cap_lens], jnp.int32)
    word_mask = (jnp.arange(W_max)[None, :] < n_words[:, None]).astype(jnp.float32)
    cap_t = jnp.swapaxes(cap_embs_norm * word_mask[:, :, None], 1, 2)   # (n_caps, C, W)
    inv_words = 1.0 / n_words.astype(jnp.float32)

    # --- hoisted caption-invariant aggregation logits (one Pallas call) -----
    w_logits = _aggr_logits_pallas(img_spatial_embs, params)            # (B*L, P)
    wt_all = (jnp.swapaxes(w_logits.reshape(B_v, L, P), 1, 2)
              * params["scale"].reshape(()))                            # (B, P, L), once

    # --- pad the caption axis to a multiple of the caption tile -------------
    NC = nc_tile
    n_caps_pad = -(-n_caps // NC) * NC
    pad = n_caps_pad - n_caps
    if pad:
        keep_in = jnp.concatenate(
            [score_mask, jnp.ones((pad, B_v, L), jnp.float32)], axis=0)
        score_in = jnp.concatenate(
            [score_all, jnp.zeros((pad, B_v, L), jnp.float32)], axis=0)
        capt_in = jnp.concatenate(
            [cap_t, jnp.zeros((pad, C, W_max), jnp.float32)], axis=0)
        invw_in = jnp.concatenate(
            [inv_words, jnp.zeros((pad,), jnp.float32)], axis=0)
    else:
        keep_in, score_in, capt_in, invw_in = score_mask, score_all, cap_t, inv_words

    out = _fused_caption_pallas(wt_all, img_spatial_embs, cls_norm,
                                keep_in, score_in, capt_in, invw_in, NC)
    improve_sims = jnp.swapaxes(out, 0, 1).reshape(B_v, n_caps_pad)[:, :n_caps]
    return improve_sims, score_mask


def init_params(key, dim, keeped_patches, dim_ratio=0.2):
    hidden = int(dim * dim_ratio)
    k1, k2 = jax.random.split(key)
    return {
        "ln_gamma": jnp.ones((dim,), jnp.float32),
        "ln_beta": jnp.zeros((dim,), jnp.float32),
        "w1": jax.random.normal(k1, (dim, hidden), jnp.float32) * 0.02,
        "b1": jnp.zeros((hidden,), jnp.float32),
        "w2": jax.random.normal(k2, (hidden, keeped_patches), jnp.float32) * 0.02,
        "b2": jnp.zeros((keeped_patches,), jnp.float32),
        "scale": jnp.ones((1,), jnp.float32),                           # torch.ones(1,1,1)
    }


if __name__ == "__main__":
    # opt: embed_size=32, num_patches=16 (perfect square -> no CLS token),
    #      sparse_ratio=0.6, aggr_ratio=0.5  => keeped_patches = int(16*0.5*0.6) = 4
    B_v, L_v, C = 2, 16, 32
    n_caps, max_words = 3, 8
    cap_lens = [8, 6, 5]
    cfg = {"sparse_ratio": 0.6, "aggr_ratio": 0.5}
    keeped_patches = int(L_v * cfg["aggr_ratio"] * cfg["sparse_ratio"])

    key = jax.random.PRNGKey(0)
    k_img, k_cap, k_par = jax.random.split(key, 3)
    img_embs = jax.random.normal(k_img, (B_v, L_v, C), jnp.float32)
    cap_embs = jax.random.normal(k_cap, (n_caps, max_words, C), jnp.float32)
    params = init_params(k_par, C, keeped_patches)

    sims, masks = cross_sparse_aggr_forward(img_embs, cap_embs, cap_lens, params,
                                            cfg, use_pallas=True)
    jax.block_until_ready((sims, masks))

    # Correctness check against the pure-JAX gather-based reference.
    sims_ref, masks_ref = cross_sparse_aggr_forward(img_embs, cap_embs, cap_lens,
                                                    params, cfg, use_pallas=False)
    assert sims.shape == (B_v, n_caps) and masks.shape == (n_caps, B_v, L_v)
    assert jnp.allclose(sims, sims_ref, rtol=1e-5, atol=1e-5)
    assert jnp.allclose(masks, masks_ref)

    print("KERNEL_OK")
</pallas_src>

<mosaic_0001>
module attributes {stable_mosaic.version = 11 : i64} {
  func.func @_aggr_logits_kernel(%arg0: i32, %arg1: memref<2x16x32xf32, #tpu.memory_space<vmem>>, %arg2: memref<1x32xf32, #tpu.memory_space<vmem>>, %arg3: memref<1x32xf32, #tpu.memory_space<vmem>>, %arg4: memref<32x6xf32, #tpu.memory_space<vmem>>, %arg5: memref<1x6xf32, #tpu.memory_space<vmem>>, %arg6: memref<6x4xf32, #tpu.memory_space<vmem>>, %arg7: memref<1x4xf32, #tpu.memory_space<vmem>>, %arg8: memref<32x4xf32, #tpu.memory_space<vmem>>) attributes {dimension_semantics = [#tpu.dimension_semantics<arbitrary>], iteration_bounds = array<i64: 1>, scalar_prefetch = 0 : i64, scratch_operands = 0 : i64, tpu.core_type = #tpu.core_type<tc>, window_params = [{pipeline_mode = #tpu.pipeline_mode<synchronous>, transform_indices = @transform_0, window_bounds = array<i64: 2, 16, 32>}, {pipeline_mode = #tpu.pipeline_mode<synchronous>, transform_indices = @transform_1, window_bounds = array<i64: 1, 32>}, {pipeline_mode = #tpu.pipeline_mode<synchronous>, transform_indices = @transform_2, window_bounds = array<i64: 1, 32>}, {pipeline_mode = #tpu.pipeline_mode<synchronous>, transform_indices = @transform_3, window_bounds = array<i64: 32, 6>}, {pipeline_mode = #tpu.pipeline_mode<synchronous>, transform_indices = @transform_4, window_bounds = array<i64: 1, 6>}, {pipeline_mode = #tpu.pipeline_mode<synchronous>, transform_indices = @transform_5, window_bounds = array<i64: 6, 4>}, {pipeline_mode = #tpu.pipeline_mode<synchronous>, transform_indices = @transform_6, window_bounds = array<i64: 1, 4>}, {pipeline_mode = #tpu.pipeline_mode<synchronous>, transform_indices = @transform_7, window_bounds = array<i64: 32, 4>}]} {
    %c0 = arith.constant 0 : index
    %c0_0 = arith.constant 0 : index
    %c0_1 = arith.constant 0 : index
    %0 = vector.load %arg1[%c0, %c0_0, %c0_1] : memref<2x16x32xf32, #tpu.memory_space<vmem>>, vector<2x16x32xf32>
    %1 = vector.shape_cast %0 : vector<2x16x32xf32> to vector<32x32xf32>
    %cst = arith.constant dense<0.000000e+00> : vector<32xf32>
    %2 = vector.multi_reduction <add>, %1, %cst [1] : vector<32x32xf32> to vector<32xf32>
    %3 = vector.shape_cast %2 : vector<32xf32> to vector<32x1xf32>
    %cst_2 = arith.constant 3.200000e+01 : f32
    %4 = vector.broadcast %cst_2 : f32 to vector<32x1xf32>
    %5 = arith.divf %3, %4 : vector<32x1xf32>
    %6 = vector.broadcast %5 : vector<32x1xf32> to vector<32x32xf32>
    %7 = arith.subf %1, %6 : vector<32x32xf32>
    %8 = arith.mulf %7, %7 : vector<32x32xf32>
    %cst_3 = arith.constant dense<0.000000e+00> : vector<32xf32>
    %9 = vector.multi_reduction <add>, %8, %cst_3 [1] : vector<32x32xf32> to vector<32xf32>
    %10 = vector.shape_cast %9 : vector<32xf32> to vector<32x1xf32>
    %cst_4 = arith.constant 3.200000e+01 : f32
    %11 = vector.broadcast %cst_4 : f32 to vector<32x1xf32>
    %12 = arith.divf %10, %11 : vector<32x1xf32>
    %13 = vector.broadcast %5 : vector<32x1xf32> to vector<32x32xf32>
    %14 = arith.subf %1, %13 : vector<32x32xf32>
    %cst_5 = arith.constant 9.99999974E-6 : f32
    %15 = vector.broadcast %cst_5 : f32 to vector<32x1xf32>
    %16 = arith.addf %12, %15 : vector<32x1xf32>
    %17 = math.rsqrt %16 : vector<32x1xf32>
    %18 = vector.broadcast %17 : vector<32x1xf32> to vector<32x32xf32>
    %19 = arith.mulf %14, %18 : vector<32x32xf32>
    %c0_6 = arith.constant 0 : index
    %c0_7 = arith.constant 0 : index
    %20 = vector.load %arg2[%c0_6, %c0_7] : memref<1x32xf32, #tpu.memory_space<vmem>>, vector<1x32xf32>
    %21 = vector.broadcast %20 : vector<1x32xf32> to vector<32x32xf32>
    %22 = arith.mulf %19, %21 : vector<32x32xf32>
    %c0_8 = arith.constant 0 : index
    %c0_9 = arith.constant 0 : index
    %23 = vector.load %arg3[%c0_8, %c0_9] : memref<1x32xf32, #tpu.memory_space<vmem>>, vector<1x32xf32>
    %24 = vector.broadcast %23 : vector<1x32xf32> to vector<32x32xf32>
    %25 = arith.addf %22, %24 : vector<32x32xf32>
    %c0_10 = arith.constant 0 : index
    %c0_11 = arith.constant 0 : index
    %26 = vector.load %arg4[%c0_10, %c0_11] : memref<32x6xf32, #tpu.memory_space<vmem>>, vector<32x6xf32>
    %cst_12 = arith.constant dense<0.000000e+00> : vector<32x6xf32>
    %27 = tpu.matmul %25, %26, %cst_12 {dimension_numbers = #tpu.dot_dimension_numbers<[1], [0], [0], [1], [0, 0, 1, 1], [], []>} : vector<32x32xf32>, vector<32x6xf32>, vector<32x6xf32> -> vector<32x6xf32>
    %c0_13 = arith.constant 0 : index
    %c0_14 = arith.constant 0 : index
    %28 = vector.load %arg5[%c0_13, %c0_14] : memref<1x6xf32, #tpu.memory_space<vmem>>, vector<1x6xf32>
    %29 = vector.broadcast %28 : vector<1x6xf32> to vector<32x6xf32>
    %30 = arith.addf %27, %29 : vector<32x6xf32>
    %cst_15 = arith.constant 5.000000e-01 : f32
    %31 = vector.broadcast %cst_15 : f32 to vector<32x6xf32>
    %32 = arith.mulf %31, %30 : vector<32x6xf32>
    %cst_16 = arith.constant 0.707106769 : f32
    %33 = vector.broadcast %cst_16 : f32 to vector<32x6xf32>
    %34 = arith.mulf %30, %33 : vector<32x6xf32>
    %35 = math.erf %34 : vector<32x6xf32>
    %cst_17 = arith.constant 1.000000e+00 : f32
    %36 = vector.broadcast %cst_17 : f32 to vector<32x6xf32>
    %37 = arith.addf %36, %35 : vector<32x6xf32>
    %38 = arith.mulf %32, %37 : vector<32x6xf32>
    %c0_18 = arith.constant 0 : index
    %c0_19 = arith.constant 0 : index
    %39 = vector.load %arg6[%c0_18, %c0_19] : memref<6x4xf32, #tpu.memory_space<vmem>>, vector<6x4xf32>
    %cst_20 = arith.constant dense<0.000000e+00> : vector<32x4xf32>
    %40 = tpu.matmul %38, %39, %cst_20 {dimension_numbers = #tpu.dot_dimension_numbers<[1], [0], [0], [1], [0, 0, 1, 1], [], []>} : vector<32x6xf32>, vector<6x4xf32>, vector<32x4xf32> -> vector<32x4xf32>
    %c0_21 = arith.constant 0 : index
    %c0_22 = arith.constant 0 : index
    %41 = vector.load %arg7[%c0_21, %c0_22] : memref<1x4xf32, #tpu.memory_space<vmem>>, vector<1x4xf32>
    %42 = vector.broadcast %41 : vector<1x4xf32> to vector<32x4xf32>
    %43 = arith.addf %40, %42 : vector<32x4xf32>
    %c0_23 = arith.constant 0 : index
    %c0_24 = arith.constant 0 : index
    %44 = vector.load %arg8[%c0_23, %c0_24] : memref<32x4xf32, #tpu.memory_space<vmem>>, vector<32x4xf32>
    tpu.vector_store %arg8[%c0_23, %c0_24], %43 {strides = array<i32>} : memref<32x4xf32, #tpu.memory_space<vmem>>, vector<32x4xf32>,
    return
  }
  func.func @transform_0(%arg0: i32) -> (i32, i32, i32) {
    %c0_i32 = arith.constant 0 : i32
    %c0_i32_0 = arith.constant 0 : i32
    %c0_i32_1 = arith.constant 0 : i32
    %c0_i32_2 = arith.constant 0 : i32
    return %c0_i32, %c0_i32_0, %c0_i32_1 : i32, i32, i32
  }
  func.func @transform_1(%arg0: i32) -> (i32, i32) {
    %c0_i32 = arith.constant 0 : i32
    %c0_i32_0 = arith.constant 0 : i32
    %c0_i32_1 = arith.constant 0 : i32
    return %c0_i32, %c0_i32_0 : i32, i32
  }
  func.func @transform_2(%arg0: i32) -> (i32, i32) {
    %c0_i32 = arith.constant 0 : i32
    %c0_i32_0 = arith.constant 0 : i32
    %c0_i32_1 = arith.constant 0 : i32
    return %c0_i32, %c0_i32_0 : i32, i32
  }
  func.func @transform_3(%arg0: i32) -> (i32, i32) {
    %c0_i32 = arith.constant 0 : i32
    %c0_i32_0 = arith.constant 0 : i32
    %c0_i32_1 = arith.constant 0 : i32
    return %c0_i32, %c0_i32_0 : i32, i32
  }
  func.func @transform_4(%arg0: i32) -> (i32, i32) {
    %c0_i32 = arith.constant 0 : i32
    %c0_i32_0 = arith.constant 0 : i32
    %c0_i32_1 = arith.constant 0 : i32
    return %c0_i32, %c0_i32_0 : i32, i32
  }
  func.func @transform_5(%arg0: i32) -> (i32, i32) {
    %c0_i32 = arith.constant 0 : i32
    %c0_i32_0 = arith.constant 0 : i32
    %c0_i32_1 = arith.constant 0 : i32
    return %c0_i32, %c0_i32_0 : i32, i32
  }
  func.func @transform_6(%arg0: i32) -> (i32, i32) {
    %c0_i32 = arith.constant 0 : i32
    %c0_i32_0 = arith.constant 0 : i32
    %c0_i32_1 = arith.constant 0 : i32
    return %c0_i32, %c0_i32_0 : i32, i32
  }
  func.func @transform_7(%arg0: i32) -> (i32, i32) {
    %c0_i32 = arith.constant 0 : i32
    %c0_i32_0 = arith.constant 0 : i32
    %c0_i32_1 = arith.constant 0 : i32
    return %c0_i32, %c0_i32_0 : i32, i32
  }
}

</mosaic_0001>

<llo_original>
// kernel: tpu_custom_call.1
$region0: #{tpu_custom_call.1}
  #allocation0 [shape = 'u32[]', space=smem, size = 0x4, offset = 0x4, fixed_abs, tag = 'smem constant byte address 0x4 - core index']
  #allocation1 [shape = 'u32[144,128]{1,0:T(1,128)}', space=vmem, size = 0x12000, scoped, tag = 'internal scratch']
  %s0 = inlined_call_operand.vmem [shape: f32[2,16,32], index: 0, kind: input, shape index: {}]
  %s1 = inlined_call_operand.vmem [shape: f32[1,32], index: 1, kind: input, shape index: {}]
  %s2 = inlined_call_operand.vmem [shape: f32[1,32], index: 2, kind: input, shape index: {}]
  %s3 = inlined_call_operand.vmem [shape: f32[32,6], index: 3, kind: input, shape index: {}]
  %s4 = inlined_call_operand.vmem [shape: f32[1,6], index: 4, kind: input, shape index: {}]
  %s5 = inlined_call_operand.vmem [shape: f32[6,4], index: 5, kind: input, shape index: {}]
  %s6 = inlined_call_operand.vmem [shape: f32[1,4], index: 6, kind: input, shape index: {}]
  %s7 = inlined_call_operand.vmem [shape: f32[32,4], index: 7, kind: output, shape index: {}]
  %s8 = sld [smem:[#allocation0]]
  $region38: #{tpu_custom_call.1} parent=0
    _
  %s10 = ssub.s32 1, %s8
  %s11 = scalar_select 0, %s10, %s8
  // Predicated region
  $region2: #{tpu_custom_call.1} parent=0 // pred_check
    _
  $region3: #{tpu_custom_call.1} parent=0 // pred_check_branch
    %13 = sbr.rel (0) target = $region5
  $region4: #{tpu_custom_call.1} parent=0 // pred_region
    _
  $region5: #{tpu_custom_call.1} parent=0 // pred_fallthru
    _
  // Predicated region
  $region6: #{tpu_custom_call.1} parent=0 // pred_check
    _
  $region7: #{tpu_custom_call.1} parent=0 // pred_check_branch
    %15 = sbr.rel (0) target = $region9
  $region8: #{tpu_custom_call.1} parent=0 // pred_region
    _
  $region9: #{tpu_custom_call.1} parent=0 // pred_fallthru
    _
  // Predicated region
  $region10: #{tpu_custom_call.1} parent=0 // pred_check
    _
  $region11: #{tpu_custom_call.1} parent=0 // pred_check_branch
    %17 = sbr.rel (0) target = $region13
  $region12: #{tpu_custom_call.1} parent=0 // pred_region
    _
  $region13: #{tpu_custom_call.1} parent=0 // pred_fallthru
    _
  // Predicated region
  $region14: #{tpu_custom_call.1} parent=0 // pred_check
    _
  $region15: #{tpu_custom_call.1} parent=0 // pred_check_branch
    %19 = sbr.rel (0) target = $region17
  $region16: #{tpu_custom_call.1} parent=0 // pred_region
    _
  $region17: #{tpu_custom_call.1} parent=0 // pred_fallthru
    _
  // Predicated region
  $region18: #{tpu_custom_call.1} parent=0 // pred_check
    _
  $region19: #{tpu_custom_call.1} parent=0 // pred_check_branch
    %21 = sbr.rel (0) target = $region21
  $region20: #{tpu_custom_call.1} parent=0 // pred_region
    _
  $region21: #{tpu_custom_call.1} parent=0 // pred_fallthru
    _
  // Predicated region
  $region22: #{tpu_custom_call.1} parent=0 // pred_check
    _
  $region23: #{tpu_custom_call.1} parent=0 // pred_check_branch
    %23 = sbr.rel (0) target = $region25
  $region24: #{tpu_custom_call.1} parent=0 // pred_region
    _
  $region25: #{tpu_custom_call.1} parent=0 // pred_fallthru
    _
  // Predicated region
  $region26: #{tpu_custom_call.1} parent=0 // pred_check
    _
  $region27: #{tpu_custom_call.1} parent=0 // pred_check_branch
    %25 = sbr.rel (0) target = $region29
  $region28: #{tpu_custom_call.1} parent=0 // pred_region
    _
  $region29: #{tpu_custom_call.1} parent=0 // pred_fallthru
    _
  %v26 = vld [vmem:[%s0] sm:$0xff]
  %v27 = vld [vmem:[%s0 + $0x8] sm:$0xff]
  %v28 = vld [vmem:[%s0 + $0x10] sm:$0xff]
  %v29 = vld [vmem:[%s0 + $0x18] sm:$0xff]
  %vm30 = vcmask 261120
  %v31 = vsel %vm30, %v26, 0.0
  %32 = vadd.xlane.f32.xlu0 %v31
  %v33 = vpop.xlane.xlu0 %32
  %v34 = vsel %vm30, %v27, 0.0
  %35 = vadd.xlane.f32.xlu0 %v34
  %v36 = vpop.xlane.xlu0 %35
  %v37 = vsel %vm30, %v28, 0.0
  %38 = vadd.xlane.f32.xlu0 %v37
  %v39 = vpop.xlane.xlu0 %38
  %v40 = vsel %vm30, %v29, 0.0
  %41 = vadd.xlane.f32.xlu0 %v40
  %v42 = vpop.xlane.xlu0 %41
  %v43 = vrcp.pop 32.0
  %v44 = vmul.f32 %v33, %v43
  %v45 = vmul.f32 %v36, %v43
  %v46 = vmul.f32 %v39, %v43
  %v47 = vmul.f32 %v42, %v43
  %v48 = vsub.f32 %v26, %v44
  %v49 = vsub.f32 %v27, %v45
  %v50 = vsub.f32 %v28, %v46
  %v51 = vsub.f32 %v29, %v47
  %v52 = vmul.f32 %v48, %v48
  %v53 = vmul.f32 %v49, %v49
  %v54 = vmul.f32 %v50, %v50
  %v55 = vmul.f32 %v51, %v51
  %v56 = vsel %vm30, %v52, 0.0
  %57 = vadd.xlane.f32.xlu0 %v56
  %v58 = vpop.xlane.xlu0 %57
  %v59 = vsel %vm30, %v53, 0.0
  %60 = vadd.xlane.f32.xlu0 %v59
  %v61 = vpop.xlane.xlu0 %60
  %v62 = vsel %vm30, %v54, 0.0
  %63 = vadd.xlane.f32.xlu0 %v62
  %v64 = vpop.xlane.xlu0 %63
  %v65 = vsel %vm30, %v55, 0.0
  %66 = vadd.xlane.f32.xlu0 %v65
  %v67 = vpop.xlane.xlu0 %66
  %v68 = vmul.f32 %v58, %v43
  %v69 = vmul.f32 %v61, %v43
  %v70 = vmul.f32 %v64, %v43
  %v71 = vmul.f32 %v67, %v43
  %v72 = vadd.f32 %v68, 1e-05
  %v73 = vadd.f32 %v69, 1e-05
  %v74 = vadd.f32 %v70, 1e-05
  %v75 = vadd.f32 %v71, 1e-05
  %v76 = vrsqrt.pop %v72
  %v77 = vrsqrt.pop %v73
  %v78 = vrsqrt.pop %v74
  %v79 = vrsqrt.pop %v75
  %v80 = vmul.f32 %v48, %v76
  %v81 = vmul.f32 %v49, %v77
  %v82 = vmul.f32 %v50, %v78
  %v83 = vmul.f32 %v51, %v79
  %v84 = vld [vmem:[%s1] sm:$0x1]
  %v86 = vlaneseq
  %v87 = vshrl.u32 %v86, 7
  %v88 = vsub.s32 0, %v87
  %v89 = vrot.slane %v84, %v88
  %v91 = vmul.f32 %v80, %v89
  %v92 = vmul.f32 %v81, %v89
  %v93 = vmul.f32 %v82, %v89
  %v94 = vmul.f32 %v83, %v89
  %v95 = vld [vmem:[%s2] sm:$0x1]
  %v97 = vlaneseq
  %v98 = vshrl.u32 %v97, 7
  %v99 = vsub.s32 0, %v98
  %v100 = vrot.slane %v95, %v99
  %v102 = vadd.f32 %v91, %v100
  %v103 = vadd.f32 %v92, %v100
  %v104 = vadd.f32 %v93, %v100
  %v105 = vadd.f32 %v94, %v100
  %v106 = vld [vmem:[%s3] sm:$0xff]
  %v107 = vld [vmem:[%s3 + $0x8] sm:$0xff]
  %v108 = vld [vmem:[%s3 + $0x10] sm:$0xff]
  %v109 = vld [vmem:[%s3 + $0x18] sm:$0xff]
  %v110 = vld [vmem:[%s4] sm:$0x1]
  %v112 = vlaneseq
  %v113 = vshrl.u32 %v112, 7
  %v114 = vsub.s32 0, %v113
  %v115 = vrot.slane %v110, %v114
  %v118 = vsel %vm30, %v102, 0
  %v121 = vsel %vm30, %v103, 0
  %v124 = vsel %vm30, %v104, 0
  %v127 = vsel %vm30, %v105, 0
  %129 = vmatprep.subr.mxu0 0.0
  %130 = vmatpush1.msra.mxu0 %v106
  %131 = vmatprep.subr.mxu0 0.0
  %132 = vmatpush1.msra.mxu0 %v107
  %133 = vmatprep.subr.mxu0 0.0
  %134 = vmatpush1.msra.mxu0 %v108
  %135 = vmatprep.subr.mxu0 0.0
  %136 = vmatpush1.msra.mxu0 %v109
  %137 = vmatprep.subr.mxu0 0.0
  %138 = vmatpush1.msra.mxu0 0.0
  %139 = vmatprep.subr.mxu0 0.0
  %140 = vmatpush1.msra.mxu0 0.0
  %141 = vmatprep.subr.mxu0 0.0
  %142 = vmatpush1.msra.mxu0 0.0
  %143 = vmatprep.subr.mxu0 0.0
  %144 = vmatpush1.msra.mxu0 0.0
  %145 = vmatprep.subr.mxu0 0.0
  %146 = vmatpush1.msra.mxu0 0.0
  %147 = vmatprep.subr.mxu0 0.0
  %148 = vmatpush1.msra.mxu0 0.0
  %149 = vmatprep.subr.mxu0 0.0
  %150 = vmatpush1.msra.mxu0 0.0
  %151 = vmatprep.subr.mxu0 0.0
  %152 = vmatpush1.msra.mxu0 0.0
  %153 = vmatprep.subr.mxu0 0.0
  %154 = vmatpush1.msra.mxu0 0.0
  %155 = vmatprep.subr.mxu0 0.0
  %156 = vmatpush1.msra.mxu0 0.0
  %157 = vmatprep.subr.mxu0 0.0
  %158 = vmatpush1.msra.mxu0 0.0
  %159 = vmatprep.subr.mxu0 0.0
  %160 = vmatpush1.msra.mxu0 0.0
  %161 = vmatprep.subr.mxu0 0.0
  %162 = vmatpush1.msra.mxu0 0.0
  %163 = vmatprep.subr.mxu0 0.0
  %164 = vmatpush1.msra.mxu0 0.0
  %165 = vmatprep.subr.mxu0 0.0
  %166 = vmatpush1.msra.mxu0 0.0
  %167 = vmatprep.subr.mxu0 0.0
  %168 = vmatpush1.msra.mxu0 0.0
  %169 = vmatprep.subr.mxu0 0.0
  %170 = vmatpush1.msra.mxu0 0.0
  %171 = vmatprep.subr.mxu0 0.0
  %172 = vmatpush1.msra.mxu0 0.0
  %173 = vmatprep.subr.mxu0 0.0
  %174 = vmatpush1.msra.mxu0 0.0
  %175 = vmatprep.subr.mxu0 0.0
  %176 = vmatpush1.msra.mxu0 0.0
  %177 = vmatprep.subr.mxu0 0.0
  %178 = vmatpush1.msra.mxu0 0.0
  %179 = vmatprep.subr.mxu0 0.0
  %180 = vmatpush1.msra.mxu0 0.0
  %181 = vmatprep.subr.mxu0 0.0
  %182 = vmatpush1.msra.mxu0 0.0
  %183 = vmatprep.subr.mxu0 0.0
  %184 = vmatpush1.msra.mxu0 0.0
  %185 = vmatprep.subr.mxu0 0.0
  %186 = vmatpush1.msra.mxu0 0.0
  %187 = vmatprep.subr.mxu0 0.0
  %188 = vmatpush1.msra.mxu0 0.0
  %189 = vmatprep.subr.mxu0 0.0
  %190 = vmatpush1.msra.mxu0 0.0
  %191 = vmatprep.subr.mxu0 0.0
  %192 = vmatpush1.msra.mxu0 0.0
  %193 = vmatprep.mubr.f32.mxu0 0.0
  %194 = vmatmul.mubr.f32.gmra.mrb[0].mxu0 %v118
  %v195 = vpop.f32.mrb[0].mxu0
  %v196 = vadd.f32 %v115, %v195
  %v197 = vpop.f32.mrb[0].mxu0
  %198 = vmatprep.mubr.f32.mxu0 0.0
  %199 = vmatmul.mubr.f32.gmra.mrb[0].mxu0 %v121
  %v200 = vpop.f32.mrb[0].mxu0
  %v201 = vadd.f32 %v115, %v200
  %v202 = vpop.f32.mrb[0].mxu0
  %203 = vmatprep.mubr.f32.mxu0 0.0
  %204 = vmatmul.mubr.f32.gmra.mrb[0].mxu0 %v124
  %v205 = vpop.f32.mrb[0].mxu0
  %v206 = vadd.f32 %v115, %v205
  %v207 = vpop.f32.mrb[0].mxu0
  %208 = vmatprep.mubr.f32.mxu0 0.0
  %209 = vmatmul.mubr.f32.gmra.mrb[0].mxu0 %v127
  %v210 = vpop.f32.mrb[0].mxu0
  %v211 = vadd.f32 %v115, %v210
  %v212 = vpop.f32.mrb[0].mxu0
  %213 = vdwg.mxu0
  %v214 = vmul.f32 %v196, 0.5
  %v215 = vmul.f32 %v201, 0.5
  %v216 = vmul.f32 %v206, 0.5
  %v217 = vmul.f32 %v211, 0.5
  %v218 = vmul.f32 %v196, 0.70710677
  %v219 = vmul.f32 %v201, 0.70710677
  %v220 = vmul.f32 %v206, 0.70710677
  %v221 = vmul.f32 %v211, 0.70710677
  %v222 = verf.f32.pop %v218
  %v223 = verf.f32.pop %v219
  %v224 = verf.f32.pop %v220
  %v225 = verf.f32.pop %v221
  %v226 = vadd.f32 %v222, 1.0
  %v227 = vadd.f32 %v223, 1.0
  %v228 = vadd.f32 %v224, 1.0
  %v229 = vadd.f32 %v225, 1.0
  %v230 = vmul.f32 %v214, %v226
  %v231 = vmul.f32 %v215, %v227
  %v232 = vmul.f32 %v216, %v228
  %v233 = vmul.f32 %v217, %v229
  %v234 = vld [vmem:[%s5] sm:$0x3f]
  %v235 = vld [vmem:[%s6] sm:$0x1]
  %v237 = vlaneseq
  %v238 = vshrl.u32 %v237, 7
  %v239 = vsub.s32 0, %v238
  %v240 = vrot.slane %v235, %v239
  %vm242 = vcmask 48128
  %v244 = vsel %vm242, %v230, 0
  %v247 = vsel %vm242, %v231, 0
  %v250 = vsel %vm242, %v232, 0
  %v253 = vsel %vm242, %v233, 0
  %vm255 = vcmask 1045504
  %v257 = vsel %vm255, %v234, 0
  %259 = vmatprep.subr.mxu0 0.0
  %260 = vmatpush1.msra.mxu0 %v257
  %261 = vmatprep.subr.mxu0 0.0
  %262 = vmatpush1.msra.mxu0 0.0
  %263 = vmatprep.subr.mxu0 0.0
  %264 = vmatpush1.msra.mxu0 0.0
  %265 = vmatprep.subr.mxu0 0.0
  %266 = vmatpush1.msra.mxu0 0.0
  %267 = vmatprep.subr.mxu0 0.0
  %268 = vmatpush1.msra.mxu0 0.0
  %269 = vmatprep.subr.mxu0 0.0
  %270 = vmatpush1.msra.mxu0 0.0
  %271 = vmatprep.subr.mxu0 0.0
  %272 = vmatpush1.msra.mxu0 0.0
  %273 = vmatprep.subr.mxu0 0.0
  %274 = vmatpush1.msra.mxu0 0.0
  %275 = vmatprep.subr.mxu0 0.0
  %276 = vmatpush1.msra.mxu0 0.0
  %277 = vmatprep.subr.mxu0 0.0
  %278 = vmatpush1.msra.mxu0 0.0
  %279 = vmatprep.subr.mxu0 0.0
  %280 = vmatpush1.msra.mxu0 0.0
  %281 = vmatprep.subr.mxu0 0.0
  %282 = vmatpush1.msra.mxu0 0.0
  %283 = vmatprep.subr.mxu0 0.0
  %284 = vmatpush1.msra.mxu0 0.0
  %285 = vmatprep.subr.mxu0 0.0
  %286 = vmatpush1.msra.mxu0 0.0
  %287 = vmatprep.subr.mxu0 0.0
  %288 = vmatpush1.msra.mxu0 0.0
  %289 = vmatprep.subr.mxu0 0.0
  %290 = vmatpush1.msra.mxu0 0.0
  %291 = vmatprep.subr.mxu0 0.0
  %292 = vmatpush1.msra.mxu0 0.0
  %293 = vmatprep.subr.mxu0 0.0
  %294 = vmatpush1.msra.mxu0 0.0
  %295 = vmatprep.subr.mxu0 0.0
  %296 = vmatpush1.msra.mxu0 0.0
  %297 = vmatprep.subr.mxu0 0.0
  %298 = vmatpush1.msra.mxu0 0.0
  %299 = vmatprep.subr.mxu0 0.0
  %300 = vmatpush1.msra.mxu0 0.0
  %301 = vmatprep.subr.mxu0 0.0
  %302 = vmatpush1.msra.mxu0 0.0
  %303 = vmatprep.subr.mxu0 0.0
  %304 = vmatpush1.msra.mxu0 0.0
  %305 = vmatprep.subr.mxu0 0.0
  %306 = vmatpush1.msra.mxu0 0.0
  %307 = vmatprep.subr.mxu0 0.0
  %308 = vmatpush1.msra.mxu0 0.0
  %309 = vmatprep.subr.mxu0 0.0
  %310 = vmatpush1.msra.mxu0 0.0
  %311 = vmatprep.subr.mxu0 0.0
  %312 = vmatpush1.msra.mxu0 0.0
  %313 = vmatprep.subr.mxu0 0.0
  %314 = vmatpush1.msra.mxu0 0.0
  %315 = vmatprep.subr.mxu0 0.0
  %316 = vmatpush1.msra.mxu0 0.0
  %317 = vmatprep.subr.mxu0 0.0
  %318 = vmatpush1.msra.mxu0 0.0
  %319 = vmatprep.subr.mxu0 0.0
  %320 = vmatpush1.msra.mxu0 0.0
  %321 = vmatprep.subr.mxu0 0.0
  %322 = vmatpush1.msra.mxu0 0.0
  %323 = vmatprep.mubr.f32.mxu0 0.0
  %324 = vmatmul.mubr.f32.gmra.mrb[0].mxu0 %v244
  %v325 = vpop.f32.mrb[0].mxu0
  %v326 = vadd.f32 %v240, %v325
  %v327 = vpop.f32.mrb[0].mxu0
  %328 = vmatprep.mubr.f32.mxu0 0.0
  %329 = vmatmul.mubr.f32.gmra.mrb[0].mxu0 %v247
  %v330 = vpop.f32.mrb[0].mxu0
  %v331 = vadd.f32 %v240, %v330
  %v332 = vpop.f32.mrb[0].mxu0
  %333 = vmatprep.mubr.f32.mxu0 0.0
  %334 = vmatmul.mubr.f32.gmra.mrb[0].mxu0 %v250
  %v335 = vpop.f32.mrb[0].mxu0
  %v336 = vadd.f32 %v240, %v335
  %v337 = vpop.f32.mrb[0].mxu0
  %338 = vmatprep.mubr.f32.mxu0 0.0
  %339 = vmatmul.mubr.f32.gmra.mrb[0].mxu0 %v253
  %v340 = vpop.f32.mrb[0].mxu0
  %v341 = vadd.f32 %v240, %v340
  %v342 = vpop.f32.mrb[0].mxu0
  %343 = vdwg.mxu0
  %vm344 = vcmask 31744
  %345 = vst.msk [vmem:[%s7] sm:$0xff] %vm344, %v326
  %346 = vst.msk [vmem:[%s7 + $0x8] sm:$0xff] %vm344, %v331
  %347 = vst.msk [vmem:[%s7 + $0x10] sm:$0xff] %vm344, %v336
  %348 = vst.msk [vmem:[%s7 + $0x18] sm:$0xff] %vm344, %v341
  // Predicated region
  $region30: #{tpu_custom_call.1} parent=0 // pred_check
    _
  $region31: #{tpu_custom_call.1} parent=0 // pred_check_branch
    %350 = sbr.rel (0) target = $region33
  $region32: #{tpu_custom_call.1} parent=0 // pred_region
    _
  $region33: #{tpu_custom_call.1} parent=0 // pred_fallthru
    _
  // Predicated region
  $region34: #{tpu_custom_call.1} parent=0 // pred_check
    _
  $region35: #{tpu_custom_call.1} parent=0 // pred_check_branch
    %352 = sbr.rel (0) target = $region37
  $region36: #{tpu_custom_call.1} parent=0 // pred_region
    _
  $region37: #{tpu_custom_call.1} parent=0 // pred_fallthru
    _

</llo_original>
